<compile_context>
chip_gen: v5e
topology: v5e:2x2
jax: 0.10.0
libtpu: 0.0.40
codegen_flags: <defaults>
</compile_context>

<pallas_src>
import jax
import jax.numpy as jnp
from jax.experimental import pallas as pl
from jax.experimental.pallas import tpu as pltpu

N_FEATURE = 32
HIDDEN = 256
OUT = 1


def linear_kernel(xt_ref, w1t_ref, b1_ref, w2h_ref, b2_ref, o_ref):
    # h^T = W1^T @ x^T : (H, tb) f32 -- bf16 MXU matmul with f32 accumulation.
    xt = xt_ref[...].astype(jnp.bfloat16)            # cast streamed operand on the VPU
    h = jnp.dot(w1t_ref[...], xt, preferred_element_type=jnp.float32)
    # sigmoid(z) = 0.5*tanh(z/2) + 0.5 : single EUP op per element (vs exp + rcp).
    t = jnp.tanh(0.5 * (h + b1_ref[...]))            # (H, tb); b1 column lane-broadcast
    # Dropout(0.2): eval-mode identity (inference semantics).
    # TODO(synk): training-mode dropout would use pltpu.prng_seed + prng_random_bits.
    prod = t * w2h_ref[...]                          # (H, tb); (w2/2) column broadcast
    # Reduce over H (sublane axis): VALU vreg-add tree + one sublane fold; output is
    # natively a lane-dense (1, tb) row -- no relayout, no masked stores.
    o_ref[...] = jnp.sum(prod, axis=0, keepdims=True) + b2_ref[0, 0]


def _num_tensorcores():
    # v7x exposes 2 TensorCores per chip (megacore); v5e / v6e have 1.
    try:
        if "v7" in jax.devices()[0].device_kind.lower():
            return 2
    except Exception:
        pass
    return 1


def _pick_tb(B, n_cores):
    """Batch (lane) tile: a multiple of 128 lanes that divides B.
    v7x: >= 2 steps per TensorCore so each core overlaps DMA with compute.
    v5e/v6e: single TC -> fewer, larger tiles (each grid step costs ~0.35us)."""
    if B % 128 != 0:
        return B                      # one full-batch tile; block == array, always legal
    if n_cores > 1:
        cap = max(128, (B // (2 * n_cores)) // 128 * 128)
    else:
        cap = 2048                    # ~1.5 KB/row working set; fits scoped VMEM easily
    tb = min(B, cap)
    while B % tb != 0:                # keep the grid exact (no ragged last block)
        tb -= 128
    return tb


def linear_forward(x, w1, b1, w2, b2, *, tb=None):
    B, F = x.shape
    H = w1.shape[1]
    assert w1.shape == (F, H)
    assert w2.reshape(-1).shape[0] == H * OUT

    # Wrapper-side layout plumbing: the only op touching streamed data is the cheap
    # (B,32)->(32,B) transpose (upstream producers should emit x^T directly); all other
    # prep is on weight-sized constants and fuses into their casts.
    xt = x.T                                            # (F, B) f32, streamed
    w1t = w1.T.astype(jnp.bfloat16)                     # (H, F) resident MXU weight
    b1c = b1.reshape(H, 1).astype(jnp.float32)          # (H, 1) column
    w2h = (0.5 * w2.reshape(H, 1)).astype(jnp.float32)  # (H, 1) column = w2/2
    b2_eff = (jnp.asarray(b2, jnp.float32).reshape(1, 1)
              + 0.5 * jnp.sum(w2, dtype=jnp.float32).reshape(1, 1))

    if tb is None:
        tb = _pick_tb(B, _num_tensorcores())
    num_tiles = pl.cdiv(B, tb)

    out_row = pl.pallas_call(
        linear_kernel,
        out_shape=jax.ShapeDtypeStruct((1, B), jnp.float32),   # lane-dense output slab
        grid_spec=pltpu.PrefetchScalarGridSpec(
            num_scalar_prefetch=0,
            grid=(num_tiles,),
            in_specs=[
                pl.BlockSpec((F, tb), lambda i: (0, i)),   # x^T tile (only streamed op)
                pl.BlockSpec((H, F), lambda i: (0, 0)),    # W1^T, resident in VMEM
                pl.BlockSpec((H, 1), lambda i: (0, 0)),    # b1 column
                pl.BlockSpec((H, 1), lambda i: (0, 0)),    # w2/2 column
                pl.BlockSpec(memory_space=pltpu.MemorySpace.SMEM),  # folded b2 scalar
            ],
            out_specs=pl.BlockSpec((1, tb), lambda i: (0, i)),
        ),
        compiler_params=pltpu.CompilerParams(
            dimension_semantics=("parallel",),
        ),
    )(xt, w1t, b1c, w2h, b2_eff)

    # (1, B) lane-dense slab -> (B, 1) like nn.Linear(256, 1).
    return out_row.reshape(B, OUT)


def init_params(key, n_feature):
    # Deterministic init mimicking PyTorch's U(-1/sqrt(fan_in), 1/sqrt(fan_in)).
    k1, k2, k3, k4 = jax.random.split(key, 4)
    lim1 = 1.0 / jnp.sqrt(n_feature)
    lim2 = 1.0 / jnp.sqrt(HIDDEN)
    w1 = jax.random.uniform(k1, (n_feature, HIDDEN), jnp.float32, -lim1, lim1)
    b1 = jax.random.uniform(k2, (1, HIDDEN), jnp.float32, -lim1, lim1)
    w2 = jax.random.uniform(k3, (HIDDEN, OUT), jnp.float32, -lim2, lim2)
    b2 = jax.random.uniform(k4, (1, OUT), jnp.float32, -lim2, lim2)
    return w1, b1, w2, b2


if __name__ == "__main__":
    key = jax.random.PRNGKey(0)
    kx, kp = jax.random.split(key)
    B = 512  # small demo batch; exercises the tiled path on multi-core, 1 tile on 1-TC
    x = jax.random.normal(kx, (B, N_FEATURE), jnp.float32)
    w1, b1, w2, b2 = init_params(kp, N_FEATURE)

    out = jax.block_until_ready(linear_forward(x, w1, b1, w2, b2))

    # Pure-JAX reference, numerically consistent with the kernel's mixed precision
    # (bf16 inputs to the first matmul, f32 accumulation / activation / projection).
    h = jnp.dot(x.astype(jnp.bfloat16), w1.astype(jnp.bfloat16),
                preferred_element_type=jnp.float32) + b1
    h = jax.nn.sigmoid(h)
    ref = h @ w2 + b2

    assert out.shape == (B, OUT)
    assert jnp.allclose(out, ref, atol=2e-2, rtol=2e-2), (
        float(jnp.max(jnp.abs(out - ref))))
    print("KERNEL_OK")
</pallas_src>

<mosaic_0001>
module attributes {stable_mosaic.version = 11 : i64} {
  func.func @linear_kernel(%arg0: i32, %arg1: memref<32x512xf32, #tpu.memory_space<vmem>>, %arg2: memref<256x32xbf16, #tpu.memory_space<vmem>>, %arg3: memref<256x1xf32, #tpu.memory_space<vmem>>, %arg4: memref<256x1xf32, #tpu.memory_space<vmem>>, %arg5: memref<1x1xf32, #tpu.memory_space<smem>>, %arg6: memref<1x512xf32, #tpu.memory_space<vmem>>) attributes {dimension_semantics = [#tpu.dimension_semantics<parallel>], iteration_bounds = array<i64: 1>, scalar_prefetch = 0 : i64, scratch_operands = 0 : i64, tpu.core_type = #tpu.core_type<tc>, window_params = [{transform_indices = @transform_0, window_bounds = array<i64: 32, 512>}, {pipeline_mode = #tpu.pipeline_mode<synchronous>, transform_indices = @transform_1, window_bounds = array<i64: 256, 32>}, {pipeline_mode = #tpu.pipeline_mode<synchronous>, transform_indices = @transform_2, window_bounds = array<i64: 256, 1>}, {pipeline_mode = #tpu.pipeline_mode<synchronous>, transform_indices = @transform_3, window_bounds = array<i64: 256, 1>}, {transform_indices = @transform_4, window_bounds = array<i64: 1, 1>}, {transform_indices = @transform_5, window_bounds = array<i64: 1, 512>}]} {
    %c0 = arith.constant 0 : index
    %c0_0 = arith.constant 0 : index
    %0 = vector.load %arg1[%c0, %c0_0] : memref<32x512xf32, #tpu.memory_space<vmem>>, vector<32x512xf32>
    %1 = arith.truncf %0 : vector<32x512xf32> to vector<32x512xbf16>
    %c0_1 = arith.constant 0 : index
    %c0_2 = arith.constant 0 : index
    %2 = vector.load %arg2[%c0_1, %c0_2] : memref<256x32xbf16, #tpu.memory_space<vmem>>, vector<256x32xbf16>
    %cst = arith.constant dense<0.000000e+00> : vector<256x512xf32>
    %3 = tpu.matmul %2, %1, %cst {dimension_numbers = #tpu.dot_dimension_numbers<[1], [0], [0], [1], [0, 0, 1, 1], [], []>} : vector<256x32xbf16>, vector<32x512xbf16>, vector<256x512xf32> -> vector<256x512xf32>
    %c0_3 = arith.constant 0 : index
    %c0_4 = arith.constant 0 : index
    %4 = vector.load %arg3[%c0_3, %c0_4] : memref<256x1xf32, #tpu.memory_space<vmem>>, vector<256x1xf32>
    %5 = vector.broadcast %4 : vector<256x1xf32> to vector<256x512xf32>
    %6 = arith.addf %3, %5 : vector<256x512xf32>
    %cst_5 = arith.constant 5.000000e-01 : f32
    %7 = vector.broadcast %cst_5 : f32 to vector<256x512xf32>
    %8 = arith.mulf %7, %6 : vector<256x512xf32>
    %9 = math.tanh %8 : vector<256x512xf32>
    %c0_6 = arith.constant 0 : index
    %c0_7 = arith.constant 0 : index
    %10 = vector.load %arg4[%c0_6, %c0_7] : memref<256x1xf32, #tpu.memory_space<vmem>>, vector<256x1xf32>
    %11 = vector.broadcast %10 : vector<256x1xf32> to vector<256x512xf32>
    %12 = arith.mulf %9, %11 : vector<256x512xf32>
    %cst_8 = arith.constant dense<0.000000e+00> : vector<512xf32>
    %13 = vector.multi_reduction <add>, %12, %cst_8 [0] : vector<256x512xf32> to vector<512xf32>
    %14 = vector.shape_cast %13 : vector<512xf32> to vector<1x512xf32>
    %c0_9 = arith.constant 0 : index
    %c0_10 = arith.constant 0 : index
    %15 = memref.load %arg5[%c0_9, %c0_10] : memref<1x1xf32, #tpu.memory_space<smem>>
    %16 = vector.broadcast %15 : f32 to vector<1x512xf32>
    %17 = arith.addf %14, %16 : vector<1x512xf32>
    %c0_11 = arith.constant 0 : index
    %c0_12 = arith.constant 0 : index
    %18 = vector.load %arg6[%c0_11, %c0_12] : memref<1x512xf32, #tpu.memory_space<vmem>>, vector<1x512xf32>
    tpu.vector_store %arg6[%c0_11, %c0_12], %17 {strides = array<i32>} : memref<1x512xf32, #tpu.memory_space<vmem>>, vector<1x512xf32>,
    return
  }
  func.func @transform_0(%arg0: i32) -> (i32, i32) {
    %c0_i32 = arith.constant 0 : i32
    %c0_i32_0 = arith.constant 0 : i32
    return %c0_i32, %arg0 : i32, i32
  }
  func.func @transform_1(%arg0: i32) -> (i32, i32) {
    %c0_i32 = arith.constant 0 : i32
    %c0_i32_0 = arith.constant 0 : i32
    %c0_i32_1 = arith.constant 0 : i32
    return %c0_i32, %c0_i32_0 : i32, i32
  }
  func.func @transform_2(%arg0: i32) -> (i32, i32) {
    %c0_i32 = arith.constant 0 : i32
    %c0_i32_0 = arith.constant 0 : i32
    %c0_i32_1 = arith.constant 0 : i32
    return %c0_i32, %c0_i32_0 : i32, i32
  }
  func.func @transform_3(%arg0: i32) -> (i32, i32) {
    %c0_i32 = arith.constant 0 : i32
    %c0_i32_0 = arith.constant 0 : i32
    %c0_i32_1 = arith.constant 0 : i32
    return %c0_i32, %c0_i32_0 : i32, i32
  }
  func.func @transform_4(%arg0: i32) -> (i32, i32) {
    %c0_i32 = arith.constant 0 : i32
    %c0_i32_0 = arith.constant 0 : i32
    %c0_i32_1 = arith.constant 0 : i32
    return %c0_i32, %c0_i32_0 : i32, i32
  }
  func.func @transform_5(%arg0: i32) -> (i32, i32) {
    %c0_i32 = arith.constant 0 : i32
    %c0_i32_0 = arith.constant 0 : i32
    return %c0_i32, %arg0 : i32, i32
  }
}

</mosaic_0001>

<llo_original>
// kernel: tpu_custom_call.1
$region0: #{tpu_custom_call.1}
  #allocation0 [shape = 'u32[]', space=smem, size = 0x4, offset = 0x4, fixed_abs, tag = 'smem constant byte address 0x4 - core index']
  #allocation1 [shape = 'u32[72,128]{1,0:T(1,128)}', space=vmem, size = 0x9000, scoped, tag = 'internal scratch']
  #allocation2 [shape = 'f32[1,1]{1,0:T(1,128)S(6)}', space=smem, size = 0x200, scoped, tag = 'scoped memory for tpu_custom_call.1']
  %s0 = inlined_call_operand.vmem [shape: f32[32,512], index: 0, kind: input, shape index: {}]
  %s1 = inlined_call_operand.vmem [shape: bf16[256,32], index: 1, kind: input, shape index: {}]
  %s2 = inlined_call_operand.vmem [shape: f32[256,1], index: 2, kind: input, shape index: {}]
  %s3 = inlined_call_operand.vmem [shape: f32[256,1], index: 3, kind: input, shape index: {}]
  %s4 = inlined_call_operand.<no memory space> [shape: f32[1,1], index: 4, kind: input, shape index: {}]
  %s5 = inlined_call_operand.hbm [shape: f32[1,512], index: 5, kind: output, shape index: {}]
  %s6 = sld [smem:[#allocation0]]
  $region30: #{tpu_custom_call.1} parent=0
    _
  %s8 = ssub.s32 1, %s6
  %s9 = scalar_select 0, %s8, %s6
  %10 = sst [smem:[#allocation2]] %s4
  $region1: #{tpu_custom_call.1} parent=0
    #allocation3 [shape = 'u8[2048]{0}', space=vmem, size = 0x800, scoped, tag = 'output window, operand 0, single buffered']
    #allocation4 [shape = 's32[1]{0}', space=sflag, size = 0x4, scoped, tag = 'scoped memory for tpu_custom_call.1']
    %11 = vsyncpa [#allocation4], 0
    // Predicated region
    $region2: #{tpu_custom_call.1} parent=1 // pred_check
      _
    $region3: #{tpu_custom_call.1} parent=1 // pred_check_branch
      %13 = sbr.rel (0) target = $region5
    $region4: #{tpu_custom_call.1} parent=1 // pred_region
      _
    $region5: #{tpu_custom_call.1} parent=1 // pred_fallthru
      _
    // Predicated region
    $region6: #{tpu_custom_call.1} parent=1 // pred_check
      _
    $region7: #{tpu_custom_call.1} parent=1 // pred_check_branch
      %15 = sbr.rel (0) target = $region9
    $region8: #{tpu_custom_call.1} parent=1 // pred_region
      _
    $region9: #{tpu_custom_call.1} parent=1 // pred_fallthru
      _
    // Predicated region
    $region10: #{tpu_custom_call.1} parent=1 // pred_check
      _
    $region11: #{tpu_custom_call.1} parent=1 // pred_check_branch
      %17 = sbr.rel (0) target = $region13
    $region12: #{tpu_custom_call.1} parent=1 // pred_region
      _
    $region13: #{tpu_custom_call.1} parent=1 // pred_fallthru
      _
    // Predicated region
    $region14: #{tpu_custom_call.1} parent=1 // pred_check
      _
    $region15: #{tpu_custom_call.1} parent=1 // pred_check_branch
      %19 = sbr.rel (0) target = $region17
    $region16: #{tpu_custom_call.1} parent=1 // pred_region
      _
    $region17: #{tpu_custom_call.1} parent=1 // pred_fallthru
      _
    // Predicated region
    $region18: #{tpu_custom_call.1} parent=1 // pred_check
      _
    $region19: #{tpu_custom_call.1} parent=1 // pred_check_branch
      %21 = sbr.rel (0) target = $region21
    $region20: #{tpu_custom_call.1} parent=1 // pred_region
      _
    $region21: #{tpu_custom_call.1} parent=1 // pred_fallthru
      _
    %v23 = vld [vmem:[%s0] sm:$0xff]
    %v24 = vld [vmem:[%s0 + $0x8] sm:$0xff]
    %v25 = vld [vmem:[%s0 + $0x10] sm:$0xff]
    %v26 = vld [vmem:[%s0 + $0x18] sm:$0xff]
    %v27 = vld [vmem:[%s0 + $0x20] sm:$0xff]
    %v28 = vld [vmem:[%s0 + $0x28] sm:$0xff]
    %v29 = vld [vmem:[%s0 + $0x30] sm:$0xff]
    %v30 = vld [vmem:[%s0 + $0x38] sm:$0xff]
    %v31 = vld [vmem:[%s0 + $0x40] sm:$0xff]
    %v32 = vld [vmem:[%s0 + $0x48] sm:$0xff]
    %v33 = vld [vmem:[%s0 + $0x50] sm:$0xff]
    %v34 = vld [vmem:[%s0 + $0x58] sm:$0xff]
    %v35 = vld [vmem:[%s0 + $0x60] sm:$0xff]
    %v36 = vld [vmem:[%s0 + $0x68] sm:$0xff]
    %v37 = vld [vmem:[%s0 + $0x70] sm:$0xff]
    %v38 = vld [vmem:[%s0 + $0x78] sm:$0xff]
    %v39 = vpack.c.bf16 %v27, %v23
    %v40 = vpack.c.bf16 %v28, %v24
    %v41 = vpack.c.bf16 %v29, %v25
    %v42 = vpack.c.bf16 %v30, %v26
    %v43 = vpack.c.bf16 %v35, %v31
    %v44 = vpack.c.bf16 %v36, %v32
    %v45 = vpack.c.bf16 %v37, %v33
    %v46 = vpack.c.bf16 %v38, %v34
    %v47 = vld [vmem:[%s1] sm:$0xf]
    %v48 = vld [vmem:[%s1 + $0x4] sm:$0xf]
    %v49 = vld [vmem:[%s1 + $0x8] sm:$0xf]
    %v50 = vld [vmem:[%s1 + $0xc] sm:$0xf]
    %v51 = vld [vmem:[%s1 + $0x10] sm:$0xf]
    %v52 = vld [vmem:[%s1 + $0x14] sm:$0xf]
    %v53 = vld [vmem:[%s1 + $0x18] sm:$0xf]
    %v54 = vld [vmem:[%s1 + $0x1c] sm:$0xf]
    %v55 = vld [vmem:[%s1 + $0x20] sm:$0xf]
    %v56 = vld [vmem:[%s1 + $0x24] sm:$0xf]
    %v57 = vld [vmem:[%s1 + $0x28] sm:$0xf]
    %v58 = vld [vmem:[%s1 + $0x2c] sm:$0xf]
    %v59 = vld [vmem:[%s1 + $0x30] sm:$0xf]
    %v60 = vld [vmem:[%s1 + $0x34] sm:$0xf]
    %v61 = vld [vmem:[%s1 + $0x38] sm:$0xf]
    %v62 = vld [vmem:[%s1 + $0x3c] sm:$0xf]
    %v63 = vld [vmem:[%s1 + $0x40] sm:$0xf]
    %v64 = vld [vmem:[%s1 + $0x44] sm:$0xf]
    %v65 = vld [vmem:[%s1 + $0x48] sm:$0xf]
    %v66 = vld [vmem:[%s1 + $0x4c] sm:$0xf]
    %v67 = vld [vmem:[%s1 + $0x50] sm:$0xf]
    %v68 = vld [vmem:[%s1 + $0x54] sm:$0xf]
    %v69 = vld [vmem:[%s1 + $0x58] sm:$0xf]
    %v70 = vld [vmem:[%s1 + $0x5c] sm:$0xf]
    %v71 = vld [vmem:[%s1 + $0x60] sm:$0xf]
    %v72 = vld [vmem:[%s1 + $0x64] sm:$0xf]
    %v73 = vld [vmem:[%s1 + $0x68] sm:$0xf]
    %v74 = vld [vmem:[%s1 + $0x6c] sm:$0xf]
    %v75 = vld [vmem:[%s1 + $0x70] sm:$0xf]
    %v76 = vld [vmem:[%s1 + $0x74] sm:$0xf]
    %v77 = vld [vmem:[%s1 + $0x78] sm:$0xf]
    %v78 = vld [vmem:[%s1 + $0x7c] sm:$0xf]
    %v79 = vld [vmem:[%s2] sm:$0xff]
    %v80 = vld [vmem:[%s2 + $0x8] sm:$0xff]
    %v81 = vld [vmem:[%s2 + $0x10] sm:$0xff]
    %v82 = vld [vmem:[%s2 + $0x18] sm:$0xff]
    %v83 = vld [vmem:[%s2 + $0x20] sm:$0xff]
    %v84 = vld [vmem:[%s2 + $0x28] sm:$0xff]
    %v85 = vld [vmem:[%s2 + $0x30] sm:$0xff]
    %v86 = vld [vmem:[%s2 + $0x38] sm:$0xff]
    %v87 = vld [vmem:[%s2 + $0x40] sm:$0xff]
    %v88 = vld [vmem:[%s2 + $0x48] sm:$0xff]
    %v89 = vld [vmem:[%s2 + $0x50] sm:$0xff]
    %v90 = vld [vmem:[%s2 + $0x58] sm:$0xff]
    %v91 = vld [vmem:[%s2 + $0x60] sm:$0xff]
    %v92 = vld [vmem:[%s2 + $0x68] sm:$0xff]
    %v93 = vld [vmem:[%s2 + $0x70] sm:$0xff]
    %v94 = vld [vmem:[%s2 + $0x78] sm:$0xff]
    %v95 = vld [vmem:[%s2 + $0x80] sm:$0xff]
    %v96 = vld [vmem:[%s2 + $0x88] sm:$0xff]
    %v97 = vld [vmem:[%s2 + $0x90] sm:$0xff]
    %v98 = vld [vmem:[%s2 + $0x98] sm:$0xff]
    %v99 = vld [vmem:[%s2 + $0xa0] sm:$0xff]
    %v100 = vld [vmem:[%s2 + $0xa8] sm:$0xff]
    %v101 = vld [vmem:[%s2 + $0xb0] sm:$0xff]
    %v102 = vld [vmem:[%s2 + $0xb8] sm:$0xff]
    %v103 = vld [vmem:[%s2 + $0xc0] sm:$0xff]
    %v104 = vld [vmem:[%s2 + $0xc8] sm:$0xff]
    %v105 = vld [vmem:[%s2 + $0xd0] sm:$0xff]
    %v106 = vld [vmem:[%s2 + $0xd8] sm:$0xff]
    %v107 = vld [vmem:[%s2 + $0xe0] sm:$0xff]
    %v108 = vld [vmem:[%s2 + $0xe8] sm:$0xff]
    %v109 = vld [vmem:[%s2 + $0xf0] sm:$0xff]
    %v110 = vld [vmem:[%s2 + $0xf8] sm:$0xff]
    %112 = vset.pattern.permute.xlu0 0
    %113 = vperm.xlu0 %112, %v79
    %v114 = vpop.permute.xlu0 %113
    %117 = vset.pattern.permute.xlu0 0
    %118 = vperm.xlu0 %117, %v80
    %v119 = vpop.permute.xlu0 %118
    %122 = vset.pattern.permute.xlu0 0
    %123 = vperm.xlu0 %122, %v81
    %v124 = vpop.permute.xlu0 %123
    %127 = vset.pattern.permute.xlu0 0
    %128 = vperm.xlu0 %127, %v82
    %v129 = vpop.permute.xlu0 %128
    %132 = vset.pattern.permute.xlu0 0
    %133 = vperm.xlu0 %132, %v83
    %v134 = vpop.permute.xlu0 %133
    %137 = vset.pattern.permute.xlu0 0
    %138 = vperm.xlu0 %137, %v84
    %v139 = vpop.permute.xlu0 %138
    %142 = vset.pattern.permute.xlu0 0
    %143 = vperm.xlu0 %142, %v85
    %v144 = vpop.permute.xlu0 %143
    %147 = vset.pattern.permute.xlu0 0
    %148 = vperm.xlu0 %147, %v86
    %v149 = vpop.permute.xlu0 %148
    %152 = vset.pattern.permute.xlu0 0
    %153 = vperm.xlu0 %152, %v87
    %v154 = vpop.permute.xlu0 %153
    %157 = vset.pattern.permute.xlu0 0
    %158 = vperm.xlu0 %157, %v88
    %v159 = vpop.permute.xlu0 %158
    %162 = vset.pattern.permute.xlu0 0
    %163 = vperm.xlu0 %162, %v89
    %v164 = vpop.permute.xlu0 %163
    %167 = vset.pattern.permute.xlu0 0
    %168 = vperm.xlu0 %167, %v90
    %v169 = vpop.permute.xlu0 %168
    %172 = vset.pattern.permute.xlu0 0
    %173 = vperm.xlu0 %172, %v91
    %v174 = vpop.permute.xlu0 %173
    %177 = vset.pattern.permute.xlu0 0
    %178 = vperm.xlu0 %177, %v92
    %v179 = vpop.permute.xlu0 %178
    %182 = vset.pattern.permute.xlu0 0
    %183 = vperm.xlu0 %182, %v93
    %v184 = vpop.permute.xlu0 %183
    %187 = vset.pattern.permute.xlu0 0
    %188 = vperm.xlu0 %187, %v94
    %v189 = vpop.permute.xlu0 %188
    %192 = vset.pattern.permute.xlu0 0
    %193 = vperm.xlu0 %192, %v95
    %v194 = vpop.permute.xlu0 %193
    %197 = vset.pattern.permute.xlu0 0
    %198 = vperm.xlu0 %197, %v96
    %v199 = vpop.permute.xlu0 %198
    %202 = vset.pattern.permute.xlu0 0
    %203 = vperm.xlu0 %202, %v97
    %v204 = vpop.permute.xlu0 %203
    %207 = vset.pattern.permute.xlu0 0
    %208 = vperm.xlu0 %207, %v98
    %v209 = vpop.permute.xlu0 %208
    %212 = vset.pattern.permute.xlu0 0
    %213 = vperm.xlu0 %212, %v99
    %v214 = vpop.permute.xlu0 %213
    %217 = vset.pattern.permute.xlu0 0
    %218 = vperm.xlu0 %217, %v100
    %v219 = vpop.permute.xlu0 %218
    %222 = vset.pattern.permute.xlu0 0
    %223 = vperm.xlu0 %222, %v101
    %v224 = vpop.permute.xlu0 %223
    %227 = vset.pattern.permute.xlu0 0
    %228 = vperm.xlu0 %227, %v102
    %v229 = vpop.permute.xlu0 %228
    %232 = vset.pattern.permute.xlu0 0
    %233 = vperm.xlu0 %232, %v103
    %v234 = vpop.permute.xlu0 %233
    %237 = vset.pattern.permute.xlu0 0
    %238 = vperm.xlu0 %237, %v104
    %v239 = vpop.permute.xlu0 %238
    %242 = vset.pattern.permute.xlu0 0
    %243 = vperm.xlu0 %242, %v105
    %v244 = vpop.permute.xlu0 %243
    %247 = vset.pattern.permute.xlu0 0
    %248 = vperm.xlu0 %247, %v106
    %v249 = vpop.permute.xlu0 %248
    %252 = vset.pattern.permute.xlu0 0
    %253 = vperm.xlu0 %252, %v107
    %v254 = vpop.permute.xlu0 %253
    %257 = vset.pattern.permute.xlu0 0
    %258 = vperm.xlu0 %257, %v108
    %v259 = vpop.permute.xlu0 %258
    %262 = vset.pattern.permute.xlu0 0
    %263 = vperm.xlu0 %262, %v109
    %v264 = vpop.permute.xlu0 %263
    %267 = vset.pattern.permute.xlu0 0
    %268 = vperm.xlu0 %267, %v110
    %v269 = vpop.permute.xlu0 %268
    %v303 = vunpack.c.l.b16 %v47
    %v304 = vunpack.c.l.b16 %v48
    %v305 = vunpack.c.l.b16 %v49
    %v306 = vunpack.c.l.b16 %v50
    %v307 = vunpack.c.l.b16 %v51
    %v308 = vunpack.c.l.b16 %v52
    %v309 = vunpack.c.l.b16 %v53
    %v310 = vunpack.c.l.b16 %v54
    %v311 = vunpack.c.l.b16 %v55
    %v312 = vunpack.c.l.b16 %v56
    %v313 = vunpack.c.l.b16 %v57
    %v314 = vunpack.c.l.b16 %v58
    %v315 = vunpack.c.l.b16 %v59
    %v316 = vunpack.c.l.b16 %v60
    %v317 = vunpack.c.l.b16 %v61
    %v318 = vunpack.c.l.b16 %v62
    %v319 = vunpack.c.l.b16 %v63
    %v320 = vunpack.c.l.b16 %v64
    %v321 = vunpack.c.l.b16 %v65
    %v322 = vunpack.c.l.b16 %v66
    %v323 = vunpack.c.l.b16 %v67
    %v324 = vunpack.c.l.b16 %v68
    %v325 = vunpack.c.l.b16 %v69
    %v326 = vunpack.c.l.b16 %v70
    %v327 = vunpack.c.l.b16 %v71
    %v328 = vunpack.c.l.b16 %v72
    %v329 = vunpack.c.l.b16 %v73
    %v330 = vunpack.c.l.b16 %v74
    %v331 = vunpack.c.l.b16 %v75
    %v332 = vunpack.c.l.b16 %v76
    %v333 = vunpack.c.l.b16 %v77
    %v334 = vunpack.c.l.b16 %v78
    %v335 = vpack.c.b16 %v304, %v303
    %v336 = vpack.c.b16 %v306, %v305
    %v337 = vpack.c.b16 %v308, %v307
    %v338 = vpack.c.b16 %v310, %v309
    %v339 = vpack.c.b16 %v312, %v311
    %v340 = vpack.c.b16 %v314, %v313
    %v341 = vpack.c.b16 %v316, %v315
    %v342 = vpack.c.b16 %v318, %v317
    %v343 = vpack.c.b16 %v320, %v319
    %v344 = vpack.c.b16 %v322, %v321
    %v345 = vpack.c.b16 %v324, %v323
    %v346 = vpack.c.b16 %v326, %v325
    %v347 = vpack.c.b16 %v328, %v327
    %v348 = vpack.c.b16 %v330, %v329
    %v349 = vpack.c.b16 %v332, %v331
    %v350 = vpack.c.b16 %v334, %v333
    %vm351 = vcmask 261120
    %v353 = vsel %vm351, %v335, 0
    %v356 = vsel %vm351, %v336, 0
    %v359 = vsel %vm351, %v337, 0
    %v362 = vsel %vm351, %v338, 0
    %v365 = vsel %vm351, %v339, 0
    %v368 = vsel %vm351, %v340, 0
    %v371 = vsel %vm351, %v341, 0
    %v374 = vsel %vm351, %v342, 0
    %v377 = vsel %vm351, %v343, 0
    %v380 = vsel %vm351, %v344, 0
    %v383 = vsel %vm351, %v345, 0
    %v386 = vsel %vm351, %v346, 0
    %v389 = vsel %vm351, %v347, 0
    %v392 = vsel %vm351, %v348, 0
    %v395 = vsel %vm351, %v349, 0
    %v398 = vsel %vm351, %v350, 0
    %400 = vmatpush.bf16.msra.mxu0 0
    %401 = vmatpush.bf16.msra.mxu0 0
    %402 = vmatpush.bf16.msra.mxu0 0
    %403 = vmatpush.bf16.msra.mxu0 0
    %404 = vmatpush.bf16.msra.mxu0 0
    %405 = vmatpush.bf16.msra.mxu0 0
    %406 = vmatpush.bf16.msra.mxu0 %v43
    %407 = vmatpush.bf16.msra.mxu0 %v39
    %408 = vmatmul.bf16.gmra.mxu0 %v353
    %v409 = vpop.f32.mrf.mxu0
    %v410 = vadd.f32 %v114, %v409
    %v411 = vpop.f32.mrf.mxu0
    %v412 = vadd.f32 %v119, %v411
    %413 = vmatmul.bf16.gmra.mxu0 %v356
    %v414 = vpop.f32.mrf.mxu0
    %v415 = vadd.f32 %v124, %v414
    %v416 = vpop.f32.mrf.mxu0
    %v417 = vadd.f32 %v129, %v416
    %418 = vmatmul.bf16.gmra.mxu0 %v359
    %v419 = vpop.f32.mrf.mxu0
    %v420 = vadd.f32 %v134, %v419
    %v421 = vpop.f32.mrf.mxu0
    %v422 = vadd.f32 %v139, %v421
    %423 = vmatmul.bf16.gmra.mxu0 %v362
    %v424 = vpop.f32.mrf.mxu0
    %v425 = vadd.f32 %v144, %v424
    %v426 = vpop.f32.mrf.mxu0
    %v427 = vadd.f32 %v149, %v426
    %428 = vmatmul.bf16.gmra.mxu0 %v365
    %v429 = vpop.f32.mrf.mxu0
    %v430 = vadd.f32 %v154, %v429
    %v431 = vpop.f32.mrf.mxu0
    %v432 = vadd.f32 %v159, %v431
    %433 = vmatmul.bf16.gmra.mxu0 %v368
    %v434 = vpop.f32.mrf.mxu0
    %v435 = vadd.f32 %v164, %v434
    %v436 = vpop.f32.mrf.mxu0
    %v437 = vadd.f32 %v169, %v436
    %438 = vmatmul.bf16.gmra.mxu0 %v371
    %v439 = vpop.f32.mrf.mxu0
    %v440 = vadd.f32 %v174, %v439
    %v441 = vpop.f32.mrf.mxu0
    %v442 = vadd.f32 %v179, %v441
    %443 = vmatmul.bf16.gmra.mxu0 %v374
    %v444 = vpop.f32.mrf.mxu0
    %v445 = vadd.f32 %v184, %v444
    %v446 = vpop.f32.mrf.mxu0
    %v447 = vadd.f32 %v189, %v446
    %448 = vmatmul.bf16.gmra.mxu0 %v377
    %v449 = vpop.f32.mrf.mxu0
    %v450 = vadd.f32 %v194, %v449
    %v451 = vpop.f32.mrf.mxu0
    %v452 = vadd.f32 %v199, %v451
    %453 = vmatmul.bf16.gmra.mxu0 %v380
    %v454 = vpop.f32.mrf.mxu0
    %v455 = vadd.f32 %v204, %v454
    %v456 = vpop.f32.mrf.mxu0
    %v457 = vadd.f32 %v209, %v456
    %458 = vmatmul.bf16.gmra.mxu0 %v383
    %v459 = vpop.f32.mrf.mxu0
    %v460 = vadd.f32 %v214, %v459
    %v461 = vpop.f32.mrf.mxu0
    %v462 = vadd.f32 %v219, %v461
    %463 = vmatmul.bf16.gmra.mxu0 %v386
    %v464 = vpop.f32.mrf.mxu0
    %v465 = vadd.f32 %v224, %v464
    %v466 = vpop.f32.mrf.mxu0
    %v467 = vadd.f32 %v229, %v466
    %468 = vmatmul.bf16.gmra.mxu0 %v389
    %v469 = vpop.f32.mrf.mxu0
    %v470 = vadd.f32 %v234, %v469
    %v471 = vpop.f32.mrf.mxu0
    %v472 = vadd.f32 %v239, %v471
    %473 = vmatmul.bf16.gmra.mxu0 %v392
    %v474 = vpop.f32.mrf.mxu0
    %v475 = vadd.f32 %v244, %v474
    %v476 = vpop.f32.mrf.mxu0
    %v477 = vadd.f32 %v249, %v476
    %478 = vmatmul.bf16.gmra.mxu0 %v395
    %v479 = vpop.f32.mrf.mxu0
    %v480 = vadd.f32 %v254, %v479
    %v481 = vpop.f32.mrf.mxu0
    %v482 = vadd.f32 %v259, %v481
    %483 = vmatmul.bf16.gmra.mxu0 %v398
    %v484 = vpop.f32.mrf.mxu0
    %v485 = vadd.f32 %v264, %v484
    %v486 = vpop.f32.mrf.mxu0
    %v487 = vadd.f32 %v269, %v486
    %488 = vdwg.mxu0
    %489 = vmatpush.bf16.msra.mxu0 0
    %490 = vmatpush.bf16.msra.mxu0 0
    %491 = vmatpush.bf16.msra.mxu0 0
    %492 = vmatpush.bf16.msra.mxu0 0
    %493 = vmatpush.bf16.msra.mxu0 0
    %494 = vmatpush.bf16.msra.mxu0 0
    %495 = vmatpush.bf16.msra.mxu0 %v44
    %496 = vmatpush.bf16.msra.mxu0 %v40
    %497 = vmatmul.bf16.gmra.mxu0 %v353
    %v498 = vpop.f32.mrf.mxu0
    %v499 = vadd.f32 %v114, %v498
    %v500 = vpop.f32.mrf.mxu0
    %v501 = vadd.f32 %v119, %v500
    %502 = vmatmul.bf16.gmra.mxu0 %v356
    %v503 = vpop.f32.mrf.mxu0
    %v504 = vadd.f32 %v124, %v503
    %v505 = vpop.f32.mrf.mxu0
    %v506 = vadd.f32 %v129, %v505
    %507 = vmatmul.bf16.gmra.mxu0 %v359
    %v508 = vpop.f32.mrf.mxu0
    %v509 = vadd.f32 %v134, %v508
    %v510 = vpop.f32.mrf.mxu0
    %v511 = vadd.f32 %v139, %v510
    %512 = vmatmul.bf16.gmra.mxu0 %v362
    %v513 = vpop.f32.mrf.mxu0
    %v514 = vadd.f32 %v144, %v513
    %v515 = vpop.f32.mrf.mxu0
    %v516 = vadd.f32 %v149, %v515
    %517 = vmatmul.bf16.gmra.mxu0 %v365
    %v518 = vpop.f32.mrf.mxu0
    %v519 = vadd.f32 %v154, %v518
    %v520 = vpop.f32.mrf.mxu0
    %v521 = vadd.f32 %v159, %v520
    %522 = vmatmul.bf16.gmra.mxu0 %v368
    %v523 = vpop.f32.mrf.mxu0
    %v524 = vadd.f32 %v164, %v523
    %v525 = vpop.f32.mrf.mxu0
    %v526 = vadd.f32 %v169, %v525
    %527 = vmatmul.bf16.gmra.mxu0 %v371
    %v528 = vpop.f32.mrf.mxu0
    %v529 = vadd.f32 %v174, %v528
    %v530 = vpop.f32.mrf.mxu0
    %v531 = vadd.f32 %v179, %v530
    %532 = vmatmul.bf16.gmra.mxu0 %v374
    %v533 = vpop.f32.mrf.mxu0
    %v534 = vadd.f32 %v184, %v533
    %v535 = vpop.f32.mrf.mxu0
    %v536 = vadd.f32 %v189, %v535
    %537 = vmatmul.bf16.gmra.mxu0 %v377
    %v538 = vpop.f32.mrf.mxu0
    %v539 = vadd.f32 %v194, %v538
    %v540 = vpop.f32.mrf.mxu0
    %v541 = vadd.f32 %v199, %v540
    %542 = vmatmul.bf16.gmra.mxu0 %v380
    %v543 = vpop.f32.mrf.mxu0
    %v544 = vadd.f32 %v204, %v543
    %v545 = vpop.f32.mrf.mxu0
    %v546 = vadd.f32 %v209, %v545
    %547 = vmatmul.bf16.gmra.mxu0 %v383
    %v548 = vpop.f32.mrf.mxu0
    %v549 = vadd.f32 %v214, %v548
    %v550 = vpop.f32.mrf.mxu0
    %v551 = vadd.f32 %v219, %v550
    %552 = vmatmul.bf16.gmra.mxu0 %v386
    %v553 = vpop.f32.mrf.mxu0
    %v554 = vadd.f32 %v224, %v553
    %v555 = vpop.f32.mrf.mxu0
    %v556 = vadd.f32 %v229, %v555
    %557 = vmatmul.bf16.gmra.mxu0 %v389
    %v558 = vpop.f32.mrf.mxu0
    %v559 = vadd.f32 %v234, %v558
    %v560 = vpop.f32.mrf.mxu0
    %v561 = vadd.f32 %v239, %v560
    %562 = vmatmul.bf16.gmra.mxu0 %v392
    %v563 = vpop.f32.mrf.mxu0
    %v564 = vadd.f32 %v244, %v563
    %v565 = vpop.f32.mrf.mxu0
    %v566 = vadd.f32 %v249, %v565
    %567 = vmatmul.bf16.gmra.mxu0 %v395
    %v568 = vpop.f32.mrf.mxu0
    %v569 = vadd.f32 %v254, %v568
    %v570 = vpop.f32.mrf.mxu0
    %v571 = vadd.f32 %v259, %v570
    %572 = vmatmul.bf16.gmra.mxu0 %v398
    %v573 = vpop.f32.mrf.mxu0
    %v574 = vadd.f32 %v264, %v573
    %v575 = vpop.f32.mrf.mxu0
    %v576 = vadd.f32 %v269, %v575
    %577 = vdwg.mxu0
    %578 = vmatpush.bf16.msra.mxu0 0
    %579 = vmatpush.bf16.msra.mxu0 0
    %580 = vmatpush.bf16.msra.mxu0 0
    %581 = vmatpush.bf16.msra.mxu0 0
    %582 = vmatpush.bf16.msra.mxu0 0
    %583 = vmatpush.bf16.msra.mxu0 0
    %584 = vmatpush.bf16.msra.mxu0 %v45
    %585 = vmatpush.bf16.msra.mxu0 %v41
    %586 = vmatmul.bf16.gmra.mxu0 %v353
    %v587 = vpop.f32.mrf.mxu0
    %v588 = vadd.f32 %v114, %v587
    %v589 = vpop.f32.mrf.mxu0
    %v590 = vadd.f32 %v119, %v589
    %591 = vmatmul.bf16.gmra.mxu0 %v356
    %v592 = vpop.f32.mrf.mxu0
    %v593 = vadd.f32 %v124, %v592
    %v594 = vpop.f32.mrf.mxu0
    %v595 = vadd.f32 %v129, %v594
    %596 = vmatmul.bf16.gmra.mxu0 %v359
    %v597 = vpop.f32.mrf.mxu0
    %v598 = vadd.f32 %v134, %v597
    %v599 = vpop.f32.mrf.mxu0
    %v600 = vadd.f32 %v139, %v599
    %601 = vmatmul.bf16.gmra.mxu0 %v362
    %v602 = vpop.f32.mrf.mxu0
    %v603 = vadd.f32 %v144, %v602
    %v604 = vpop.f32.mrf.mxu0
    %v605 = vadd.f32 %v149, %v604
    %606 = vmatmul.bf16.gmra.mxu0 %v365
    %v607 = vpop.f32.mrf.mxu0
    %v608 = vadd.f32 %v154, %v607
    %v609 = vpop.f32.mrf.mxu0
    %v610 = vadd.f32 %v159, %v609
    %611 = vmatmul.bf16.gmra.mxu0 %v368
    %v612 = vpop.f32.mrf.mxu0
    %v613 = vadd.f32 %v164, %v612
    %v614 = vpop.f32.mrf.mxu0
    %v615 = vadd.f32 %v169, %v614
    %616 = vmatmul.bf16.gmra.mxu0 %v371
    %v617 = vpop.f32.mrf.mxu0
    %v618 = vadd.f32 %v174, %v617
    %v619 = vpop.f32.mrf.mxu0
    %v620 = vadd.f32 %v179, %v619
    %621 = vmatmul.bf16.gmra.mxu0 %v374
    %v622 = vpop.f32.mrf.mxu0
    %v623 = vadd.f32 %v184, %v622
    %v624 = vpop.f32.mrf.mxu0
    %v625 = vadd.f32 %v189, %v624
    %626 = vmatmul.bf16.gmra.mxu0 %v377
    %v627 = vpop.f32.mrf.mxu0
    %v628 = vadd.f32 %v194, %v627
    %v629 = vpop.f32.mrf.mxu0
    %v630 = vadd.f32 %v199, %v629
    %631 = vmatmul.bf16.gmra.mxu0 %v380
    %v632 = vpop.f32.mrf.mxu0
    %v633 = vadd.f32 %v204, %v632
    %v634 = vpop.f32.mrf.mxu0
    %v635 = vadd.f32 %v209, %v634
    %636 = vmatmul.bf16.gmra.mxu0 %v383
    %v637 = vpop.f32.mrf.mxu0
    %v638 = vadd.f32 %v214, %v637
    %v639 = vpop.f32.mrf.mxu0
    %v640 = vadd.f32 %v219, %v639
    %641 = vmatmul.bf16.gmra.mxu0 %v386
    %v642 = vpop.f32.mrf.mxu0
    %v643 = vadd.f32 %v224, %v642
    %v644 = vpop.f32.mrf.mxu0
    %v645 = vadd.f32 %v229, %v644
    %646 = vmatmul.bf16.gmra.mxu0 %v389
    %v647 = vpop.f32.mrf.mxu0
    %v648 = vadd.f32 %v234, %v647
    %v649 = vpop.f32.mrf.mxu0
    %v650 = vadd.f32 %v239, %v649
    %651 = vmatmul.bf16.gmra.mxu0 %v392
    %v652 = vpop.f32.mrf.mxu0
    %v653 = vadd.f32 %v244, %v652
    %v654 = vpop.f32.mrf.mxu0
    %v655 = vadd.f32 %v249, %v654
    %656 = vmatmul.bf16.gmra.mxu0 %v395
    %v657 = vpop.f32.mrf.mxu0
    %v658 = vadd.f32 %v254, %v657
    %v659 = vpop.f32.mrf.mxu0
    %v660 = vadd.f32 %v259, %v659
    %661 = vmatmul.bf16.gmra.mxu0 %v398
    %v662 = vpop.f32.mrf.mxu0
    %v663 = vadd.f32 %v264, %v662
    %v664 = vpop.f32.mrf.mxu0
    %v665 = vadd.f32 %v269, %v664
    %666 = vdwg.mxu0
    %667 = vmatpush.bf16.msra.mxu0 0
    %668 = vmatpush.bf16.msra.mxu0 0
    %669 = vmatpush.bf16.msra.mxu0 0
    %670 = vmatpush.bf16.msra.mxu0 0
    %671 = vmatpush.bf16.msra.mxu0 0
    %672 = vmatpush.bf16.msra.mxu0 0
    %673 = vmatpush.bf16.msra.mxu0 %v46
    %674 = vmatpush.bf16.msra.mxu0 %v42
    %675 = vmatmul.bf16.gmra.mxu0 %v353
    %v676 = vpop.f32.mrf.mxu0
    %v677 = vadd.f32 %v114, %v676
    %v678 = vpop.f32.mrf.mxu0
    %v679 = vadd.f32 %v119, %v678
    %680 = vmatmul.bf16.gmra.mxu0 %v356
    %v681 = vpop.f32.mrf.mxu0
    %v682 = vadd.f32 %v124, %v681
    %v683 = vpop.f32.mrf.mxu0
    %v684 = vadd.f32 %v129, %v683
    %685 = vmatmul.bf16.gmra.mxu0 %v359
    %v686 = vpop.f32.mrf.mxu0
    %v687 = vadd.f32 %v134, %v686
    %v688 = vpop.f32.mrf.mxu0
    %v689 = vadd.f32 %v139, %v688
    %690 = vmatmul.bf16.gmra.mxu0 %v362
    %v691 = vpop.f32.mrf.mxu0
    %v692 = vadd.f32 %v144, %v691
    %v693 = vpop.f32.mrf.mxu0
    %v694 = vadd.f32 %v149, %v693
    %695 = vmatmul.bf16.gmra.mxu0 %v365
    %v696 = vpop.f32.mrf.mxu0
    %v697 = vadd.f32 %v154, %v696
    %v698 = vpop.f32.mrf.mxu0
    %v699 = vadd.f32 %v159, %v698
    %700 = vmatmul.bf16.gmra.mxu0 %v368
    %v701 = vpop.f32.mrf.mxu0
    %v702 = vadd.f32 %v164, %v701
    %v703 = vpop.f32.mrf.mxu0
    %v704 = vadd.f32 %v169, %v703
    %705 = vmatmul.bf16.gmra.mxu0 %v371
    %v706 = vpop.f32.mrf.mxu0
    %v707 = vadd.f32 %v174, %v706
    %v708 = vpop.f32.mrf.mxu0
    %v709 = vadd.f32 %v179, %v708
    %710 = vmatmul.bf16.gmra.mxu0 %v374
    %v711 = vpop.f32.mrf.mxu0
    %v712 = vadd.f32 %v184, %v711
    %v713 = vpop.f32.mrf.mxu0
    %v714 = vadd.f32 %v189, %v713
    %715 = vmatmul.bf16.gmra.mxu0 %v377
    %v716 = vpop.f32.mrf.mxu0
    %v717 = vadd.f32 %v194, %v716
    %v718 = vpop.f32.mrf.mxu0
    %v719 = vadd.f32 %v199, %v718
    %720 = vmatmul.bf16.gmra.mxu0 %v380
    %v721 = vpop.f32.mrf.mxu0
    %v722 = vadd.f32 %v204, %v721
    %v723 = vpop.f32.mrf.mxu0
    %v724 = vadd.f32 %v209, %v723
    %725 = vmatmul.bf16.gmra.mxu0 %v383
    %v726 = vpop.f32.mrf.mxu0
    %v727 = vadd.f32 %v214, %v726
    %v728 = vpop.f32.mrf.mxu0
    %v729 = vadd.f32 %v219, %v728
    %730 = vmatmul.bf16.gmra.mxu0 %v386
    %v731 = vpop.f32.mrf.mxu0
    %v732 = vadd.f32 %v224, %v731
    %v733 = vpop.f32.mrf.mxu0
    %v734 = vadd.f32 %v229, %v733
    %735 = vmatmul.bf16.gmra.mxu0 %v389
    %v736 = vpop.f32.mrf.mxu0
    %v737 = vadd.f32 %v234, %v736
    %v738 = vpop.f32.mrf.mxu0
    %v739 = vadd.f32 %v239, %v738
    %740 = vmatmul.bf16.gmra.mxu0 %v392
    %v741 = vpop.f32.mrf.mxu0
    %v742 = vadd.f32 %v244, %v741
    %v743 = vpop.f32.mrf.mxu0
    %v744 = vadd.f32 %v249, %v743
    %745 = vmatmul.bf16.gmra.mxu0 %v395
    %v746 = vpop.f32.mrf.mxu0
    %v747 = vadd.f32 %v254, %v746
    %v748 = vpop.f32.mrf.mxu0
    %v749 = vadd.f32 %v259, %v748
    %750 = vmatmul.bf16.gmra.mxu0 %v398
    %v751 = vpop.f32.mrf.mxu0
    %v752 = vadd.f32 %v264, %v751
    %v753 = vpop.f32.mrf.mxu0
    %v754 = vadd.f32 %v269, %v753
    %755 = vdwg.mxu0
    %v756 = vmul.f32 %v410, 0.5
    %v757 = vmul.f32 %v499, 0.5
    %v758 = vmul.f32 %v588, 0.5
    %v759 = vmul.f32 %v677, 0.5
    %v760 = vmul.f32 %v412, 0.5
    %v761 = vmul.f32 %v501, 0.5
    %v762 = vmul.f32 %v590, 0.5
    %v763 = vmul.f32 %v679, 0.5
    %v764 = vmul.f32 %v415, 0.5
    %v765 = vmul.f32 %v504, 0.5
    %v766 = vmul.f32 %v593, 0.5
    %v767 = vmul.f32 %v682, 0.5
    %v768 = vmul.f32 %v417, 0.5
    %v769 = vmul.f32 %v506, 0.5
    %v770 = vmul.f32 %v595, 0.5
    %v771 = vmul.f32 %v684, 0.5
    %v772 = vmul.f32 %v420, 0.5
    %v773 = vmul.f32 %v509, 0.5
    %v774 = vmul.f32 %v598, 0.5
    %v775 = vmul.f32 %v687, 0.5
    %v776 = vmul.f32 %v422, 0.5
    %v777 = vmul.f32 %v511, 0.5
    %v778 = vmul.f32 %v600, 0.5
    %v779 = vmul.f32 %v689, 0.5
    %v780 = vmul.f32 %v425, 0.5
    %v781 = vmul.f32 %v514, 0.5
    %v782 = vmul.f32 %v603, 0.5
    %v783 = vmul.f32 %v692, 0.5
    %v784 = vmul.f32 %v427, 0.5
    %v785 = vmul.f32 %v516, 0.5
    %v786 = vmul.f32 %v605, 0.5
    %v787 = vmul.f32 %v694, 0.5
    %v788 = vmul.f32 %v430, 0.5
    %v789 = vmul.f32 %v519, 0.5
    %v790 = vmul.f32 %v608, 0.5
    %v791 = vmul.f32 %v697, 0.5
    %v792 = vmul.f32 %v432, 0.5
    %v793 = vmul.f32 %v521, 0.5
    %v794 = vmul.f32 %v610, 0.5
    %v795 = vmul.f32 %v699, 0.5
    %v796 = vmul.f32 %v435, 0.5
    %v797 = vmul.f32 %v524, 0.5
    %v798 = vmul.f32 %v613, 0.5
    %v799 = vmul.f32 %v702, 0.5
    %v800 = vmul.f32 %v437, 0.5
    %v801 = vmul.f32 %v526, 0.5
    %v802 = vmul.f32 %v615, 0.5
    %v803 = vmul.f32 %v704, 0.5
    %v804 = vmul.f32 %v440, 0.5
    %v805 = vmul.f32 %v529, 0.5
    %v806 = vmul.f32 %v618, 0.5
    %v807 = vmul.f32 %v707, 0.5
    %v808 = vmul.f32 %v442, 0.5
    %v809 = vmul.f32 %v531, 0.5
    %v810 = vmul.f32 %v620, 0.5
    %v811 = vmul.f32 %v709, 0.5
    %v812 = vmul.f32 %v445, 0.5
    %v813 = vmul.f32 %v534, 0.5
    %v814 = vmul.f32 %v623, 0.5
    %v815 = vmul.f32 %v712, 0.5
    %v816 = vmul.f32 %v447, 0.5
    %v817 = vmul.f32 %v536, 0.5
    %v818 = vmul.f32 %v625, 0.5
    %v819 = vmul.f32 %v714, 0.5
    %v820 = vmul.f32 %v450, 0.5
    %v821 = vmul.f32 %v539, 0.5
    %v822 = vmul.f32 %v628, 0.5
    %v823 = vmul.f32 %v717, 0.5
    %v824 = vmul.f32 %v452, 0.5
    %v825 = vmul.f32 %v541, 0.5
    %v826 = vmul.f32 %v630, 0.5
    %v827 = vmul.f32 %v719, 0.5
    %v828 = vmul.f32 %v455, 0.5
    %v829 = vmul.f32 %v544, 0.5
    %v830 = vmul.f32 %v633, 0.5
    %v831 = vmul.f32 %v722, 0.5
    %v832 = vmul.f32 %v457, 0.5
    %v833 = vmul.f32 %v546, 0.5
    %v834 = vmul.f32 %v635, 0.5
    %v835 = vmul.f32 %v724, 0.5
    %v836 = vmul.f32 %v460, 0.5
    %v837 = vmul.f32 %v549, 0.5
    %v838 = vmul.f32 %v638, 0.5
    %v839 = vmul.f32 %v727, 0.5
    %v840 = vmul.f32 %v462, 0.5
    %v841 = vmul.f32 %v551, 0.5
    %v842 = vmul.f32 %v640, 0.5
    %v843 = vmul.f32 %v729, 0.5
    %v844 = vmul.f32 %v465, 0.5
    %v845 = vmul.f32 %v554, 0.5
    %v846 = vmul.f32 %v643, 0.5
    %v847 = vmul.f32 %v732, 0.5
    %v848 = vmul.f32 %v467, 0.5
    %v849 = vmul.f32 %v556, 0.5
    %v850 = vmul.f32 %v645, 0.5
    %v851 = vmul.f32 %v734, 0.5
    %v852 = vmul.f32 %v470, 0.5
    %v853 = vmul.f32 %v559, 0.5
    %v854 = vmul.f32 %v648, 0.5
    %v855 = vmul.f32 %v737, 0.5
    %v856 = vmul.f32 %v472, 0.5
    %v857 = vmul.f32 %v561, 0.5
    %v858 = vmul.f32 %v650, 0.5
    %v859 = vmul.f32 %v739, 0.5
    %v860 = vmul.f32 %v475, 0.5
    %v861 = vmul.f32 %v564, 0.5
    %v862 = vmul.f32 %v653, 0.5
    %v863 = vmul.f32 %v742, 0.5
    %v864 = vmul.f32 %v477, 0.5
    %v865 = vmul.f32 %v566, 0.5
    %v866 = vmul.f32 %v655, 0.5
    %v867 = vmul.f32 %v744, 0.5
    %v868 = vmul.f32 %v480, 0.5
    %v869 = vmul.f32 %v569, 0.5
    %v870 = vmul.f32 %v658, 0.5
    %v871 = vmul.f32 %v747, 0.5
    %v872 = vmul.f32 %v482, 0.5
    %v873 = vmul.f32 %v571, 0.5
    %v874 = vmul.f32 %v660, 0.5
    %v875 = vmul.f32 %v749, 0.5
    %v876 = vmul.f32 %v485, 0.5
    %v877 = vmul.f32 %v574, 0.5
    %v878 = vmul.f32 %v663, 0.5
    %v879 = vmul.f32 %v752, 0.5
    %v880 = vmul.f32 %v487, 0.5
    %v881 = vmul.f32 %v576, 0.5
    %v882 = vmul.f32 %v665, 0.5
    %v883 = vmul.f32 %v754, 0.5
    %v884 = vtanh.pop %v756
    %v885 = vtanh.pop %v757
    %v886 = vtanh.pop %v758
    %v887 = vtanh.pop %v759
    %v888 = vtanh.pop %v760
    %v889 = vtanh.pop %v761
    %v890 = vtanh.pop %v762
    %v891 = vtanh.pop %v763
    %v892 = vtanh.pop %v764
    %v893 = vtanh.pop %v765
    %v894 = vtanh.pop %v766
    %v895 = vtanh.pop %v767
    %v896 = vtanh.pop %v768
    %v897 = vtanh.pop %v769
    %v898 = vtanh.pop %v770
    %v899 = vtanh.pop %v771
    %v900 = vtanh.pop %v772
    %v901 = vtanh.pop %v773
    %v902 = vtanh.pop %v774
    %v903 = vtanh.pop %v775
    %v904 = vtanh.pop %v776
    %v905 = vtanh.pop %v777
    %v906 = vtanh.pop %v778
    %v907 = vtanh.pop %v779
    %v908 = vtanh.pop %v780
    %v909 = vtanh.pop %v781
    %v910 = vtanh.pop %v782
    %v911 = vtanh.pop %v783
    %v912 = vtanh.pop %v784
    %v913 = vtanh.pop %v785
    %v914 = vtanh.pop %v786
    %v915 = vtanh.pop %v787
    %v916 = vtanh.pop %v788
    %v917 = vtanh.pop %v789
    %v918 = vtanh.pop %v790
    %v919 = vtanh.pop %v791
    %v920 = vtanh.pop %v792
    %v921 = vtanh.pop %v793
    %v922 = vtanh.pop %v794
    %v923 = vtanh.pop %v795
    %v924 = vtanh.pop %v796
    %v925 = vtanh.pop %v797
    %v926 = vtanh.pop %v798
    %v927 = vtanh.pop %v799
    %v928 = vtanh.pop %v800
    %v929 = vtanh.pop %v801
    %v930 = vtanh.pop %v802
    %v931 = vtanh.pop %v803
    %v932 = vtanh.pop %v804
    %v933 = vtanh.pop %v805
    %v934 = vtanh.pop %v806
    %v935 = vtanh.pop %v807
    %v936 = vtanh.pop %v808
    %v937 = vtanh.pop %v809
    %v938 = vtanh.pop %v810
    %v939 = vtanh.pop %v811
    %v940 = vtanh.pop %v812
    %v941 = vtanh.pop %v813
    %v942 = vtanh.pop %v814
    %v943 = vtanh.pop %v815
    %v944 = vtanh.pop %v816
    %v945 = vtanh.pop %v817
    %v946 = vtanh.pop %v818
    %v947 = vtanh.pop %v819
    %v948 = vtanh.pop %v820
    %v949 = vtanh.pop %v821
    %v950 = vtanh.pop %v822
    %v951 = vtanh.pop %v823
    %v952 = vtanh.pop %v824
    %v953 = vtanh.pop %v825
    %v954 = vtanh.pop %v826
    %v955 = vtanh.pop %v827
    %v956 = vtanh.pop %v828
    %v957 = vtanh.pop %v829
    %v958 = vtanh.pop %v830
    %v959 = vtanh.pop %v831
    %v960 = vtanh.pop %v832
    %v961 = vtanh.pop %v833
    %v962 = vtanh.pop %v834
    %v963 = vtanh.pop %v835
    %v964 = vtanh.pop %v836
    %v965 = vtanh.pop %v837
    %v966 = vtanh.pop %v838
    %v967 = vtanh.pop %v839
    %v968 = vtanh.pop %v840
    %v969 = vtanh.pop %v841
    %v970 = vtanh.pop %v842
    %v971 = vtanh.pop %v843
    %v972 = vtanh.pop %v844
    %v973 = vtanh.pop %v845
    %v974 = vtanh.pop %v846
    %v975 = vtanh.pop %v847
    %v976 = vtanh.pop %v848
    %v977 = vtanh.pop %v849
    %v978 = vtanh.pop %v850
    %v979 = vtanh.pop %v851
    %v980 = vtanh.pop %v852
    %v981 = vtanh.pop %v853
    %v982 = vtanh.pop %v854
    %v983 = vtanh.pop %v855
    %v984 = vtanh.pop %v856
    %v985 = vtanh.pop %v857
    %v986 = vtanh.pop %v858
    %v987 = vtanh.pop %v859
    %v988 = vtanh.pop %v860
    %v989 = vtanh.pop %v861
    %v990 = vtanh.pop %v862
    %v991 = vtanh.pop %v863
    %v992 = vtanh.pop %v864
    %v993 = vtanh.pop %v865
    %v994 = vtanh.pop %v866
    %v995 = vtanh.pop %v867
    %v996 = vtanh.pop %v868
    %v997 = vtanh.pop %v869
    %v998 = vtanh.pop %v870
    %v999 = vtanh.pop %v871
    %v1000 = vtanh.pop %v872
    %v1001 = vtanh.pop %v873
    %v1002 = vtanh.pop %v874
    %v1003 = vtanh.pop %v875
    %v1004 = vtanh.pop %v876
    %v1005 = vtanh.pop %v877
    %v1006 = vtanh.pop %v878
    %v1007 = vtanh.pop %v879
    %v1008 = vtanh.pop %v880
    %v1009 = vtanh.pop %v881
    %v1010 = vtanh.pop %v882
    %v1011 = vtanh.pop %v883
    %v1012 = vld [vmem:[%s3] sm:$0xff]
    %v1013 = vld [vmem:[%s3 + $0x8] sm:$0xff]
    %v1014 = vld [vmem:[%s3 + $0x10] sm:$0xff]
    %v1015 = vld [vmem:[%s3 + $0x18] sm:$0xff]
    %v1016 = vld [vmem:[%s3 + $0x20] sm:$0xff]
    %v1017 = vld [vmem:[%s3 + $0x28] sm:$0xff]
    %v1018 = vld [vmem:[%s3 + $0x30] sm:$0xff]
    %v1019 = vld [vmem:[%s3 + $0x38] sm:$0xff]
    %v1020 = vld [vmem:[%s3 + $0x40] sm:$0xff]
    %v1021 = vld [vmem:[%s3 + $0x48] sm:$0xff]
    %v1022 = vld [vmem:[%s3 + $0x50] sm:$0xff]
    %v1023 = vld [vmem:[%s3 + $0x58] sm:$0xff]
    %v1024 = vld [vmem:[%s3 + $0x60] sm:$0xff]
    %v1025 = vld [vmem:[%s3 + $0x68] sm:$0xff]
    %v1026 = vld [vmem:[%s3 + $0x70] sm:$0xff]
    %v1027 = vld [vmem:[%s3 + $0x78] sm:$0xff]
    %v1028 = vld [vmem:[%s3 + $0x80] sm:$0xff]
    %v1029 = vld [vmem:[%s3 + $0x88] sm:$0xff]
    %v1030 = vld [vmem:[%s3 + $0x90] sm:$0xff]
    %v1031 = vld [vmem:[%s3 + $0x98] sm:$0xff]
    %v1032 = vld [vmem:[%s3 + $0xa0] sm:$0xff]
    %v1033 = vld [vmem:[%s3 + $0xa8] sm:$0xff]
    %v1034 = vld [vmem:[%s3 + $0xb0] sm:$0xff]
    %v1035 = vld [vmem:[%s3 + $0xb8] sm:$0xff]
    %v1036 = vld [vmem:[%s3 + $0xc0] sm:$0xff]
    %v1037 = vld [vmem:[%s3 + $0xc8] sm:$0xff]
    %v1038 = vld [vmem:[%s3 + $0xd0] sm:$0xff]
    %v1039 = vld [vmem:[%s3 + $0xd8] sm:$0xff]
    %v1040 = vld [vmem:[%s3 + $0xe0] sm:$0xff]
    %v1041 = vld [vmem:[%s3 + $0xe8] sm:$0xff]
    %v1042 = vld [vmem:[%s3 + $0xf0] sm:$0xff]
    %v1043 = vld [vmem:[%s3 + $0xf8] sm:$0xff]
    %1045 = vset.pattern.permute.xlu0 0
    %1046 = vperm.xlu0 %1045, %v1012
    %v1047 = vpop.permute.xlu0 %1046
    %1050 = vset.pattern.permute.xlu0 0
    %1051 = vperm.xlu0 %1050, %v1013
    %v1052 = vpop.permute.xlu0 %1051
    %1055 = vset.pattern.permute.xlu0 0
    %1056 = vperm.xlu0 %1055, %v1014
    %v1057 = vpop.permute.xlu0 %1056
    %1060 = vset.pattern.permute.xlu0 0
    %1061 = vperm.xlu0 %1060, %v1015
    %v1062 = vpop.permute.xlu0 %1061
    %1065 = vset.pattern.permute.xlu0 0
    %1066 = vperm.xlu0 %1065, %v1016
    %v1067 = vpop.permute.xlu0 %1066
    %1070 = vset.pattern.permute.xlu0 0
    %1071 = vperm.xlu0 %1070, %v1017
    %v1072 = vpop.permute.xlu0 %1071
    %1075 = vset.pattern.permute.xlu0 0
    %1076 = vperm.xlu0 %1075, %v1018
    %v1077 = vpop.permute.xlu0 %1076
    %1080 = vset.pattern.permute.xlu0 0
    %1081 = vperm.xlu0 %1080, %v1019
    %v1082 = vpop.permute.xlu0 %1081
    %1085 = vset.pattern.permute.xlu0 0
    %1086 = vperm.xlu0 %1085, %v1020
    %v1087 = vpop.permute.xlu0 %1086
    %1090 = vset.pattern.permute.xlu0 0
    %1091 = vperm.xlu0 %1090, %v1021
    %v1092 = vpop.permute.xlu0 %1091
    %1095 = vset.pattern.permute.xlu0 0
    %1096 = vperm.xlu0 %1095, %v1022
    %v1097 = vpop.permute.xlu0 %1096
    %1100 = vset.pattern.permute.xlu0 0
    %1101 = vperm.xlu0 %1100, %v1023
    %v1102 = vpop.permute.xlu0 %1101
    %1105 = vset.pattern.permute.xlu0 0
    %1106 = vperm.xlu0 %1105, %v1024
    %v1107 = vpop.permute.xlu0 %1106
    %1110 = vset.pattern.permute.xlu0 0
    %1111 = vperm.xlu0 %1110, %v1025
    %v1112 = vpop.permute.xlu0 %1111
    %1115 = vset.pattern.permute.xlu0 0
    %1116 = vperm.xlu0 %1115, %v1026
    %v1117 = vpop.permute.xlu0 %1116
    %1120 = vset.pattern.permute.xlu0 0
    %1121 = vperm.xlu0 %1120, %v1027
    %v1122 = vpop.permute.xlu0 %1121
    %1125 = vset.pattern.permute.xlu0 0
    %1126 = vperm.xlu0 %1125, %v1028
    %v1127 = vpop.permute.xlu0 %1126
    %1130 = vset.pattern.permute.xlu0 0
    %1131 = vperm.xlu0 %1130, %v1029
    %v1132 = vpop.permute.xlu0 %1131
    %1135 = vset.pattern.permute.xlu0 0
    %1136 = vperm.xlu0 %1135, %v1030
    %v1137 = vpop.permute.xlu0 %1136
    %1140 = vset.pattern.permute.xlu0 0
    %1141 = vperm.xlu0 %1140, %v1031
    %v1142 = vpop.permute.xlu0 %1141
    %1145 = vset.pattern.permute.xlu0 0
    %1146 = vperm.xlu0 %1145, %v1032
    %v1147 = vpop.permute.xlu0 %1146
    %1150 = vset.pattern.permute.xlu0 0
    %1151 = vperm.xlu0 %1150, %v1033
    %v1152 = vpop.permute.xlu0 %1151
    %1155 = vset.pattern.permute.xlu0 0
    %1156 = vperm.xlu0 %1155, %v1034
    %v1157 = vpop.permute.xlu0 %1156
    %1160 = vset.pattern.permute.xlu0 0
    %1161 = vperm.xlu0 %1160, %v1035
    %v1162 = vpop.permute.xlu0 %1161
    %1165 = vset.pattern.permute.xlu0 0
    %1166 = vperm.xlu0 %1165, %v1036
    %v1167 = vpop.permute.xlu0 %1166
    %1170 = vset.pattern.permute.xlu0 0
    %1171 = vperm.xlu0 %1170, %v1037
    %v1172 = vpop.permute.xlu0 %1171
    %1175 = vset.pattern.permute.xlu0 0
    %1176 = vperm.xlu0 %1175, %v1038
    %v1177 = vpop.permute.xlu0 %1176
    %1180 = vset.pattern.permute.xlu0 0
    %1181 = vperm.xlu0 %1180, %v1039
    %v1182 = vpop.permute.xlu0 %1181
    %1185 = vset.pattern.permute.xlu0 0
    %1186 = vperm.xlu0 %1185, %v1040
    %v1187 = vpop.permute.xlu0 %1186
    %1190 = vset.pattern.permute.xlu0 0
    %1191 = vperm.xlu0 %1190, %v1041
    %v1192 = vpop.permute.xlu0 %1191
    %1195 = vset.pattern.permute.xlu0 0
    %1196 = vperm.xlu0 %1195, %v1042
    %v1197 = vpop.permute.xlu0 %1196
    %1200 = vset.pattern.permute.xlu0 0
    %1201 = vperm.xlu0 %1200, %v1043
    %v1202 = vpop.permute.xlu0 %1201
    %v1204 = vmul.f32 %v884, %v1047
    %v1205 = vmul.f32 %v885, %v1047
    %v1206 = vmul.f32 %v886, %v1047
    %v1207 = vmul.f32 %v887, %v1047
    %v1208 = vmul.f32 %v888, %v1052
    %v1209 = vmul.f32 %v889, %v1052
    %v1210 = vmul.f32 %v890, %v1052
    %v1211 = vmul.f32 %v891, %v1052
    %v1212 = vmul.f32 %v892, %v1057
    %v1213 = vmul.f32 %v893, %v1057
    %v1214 = vmul.f32 %v894, %v1057
    %v1215 = vmul.f32 %v895, %v1057
    %v1216 = vmul.f32 %v896, %v1062
    %v1217 = vmul.f32 %v897, %v1062
    %v1218 = vmul.f32 %v898, %v1062
    %v1219 = vmul.f32 %v899, %v1062
    %v1220 = vmul.f32 %v900, %v1067
    %v1221 = vmul.f32 %v901, %v1067
    %v1222 = vmul.f32 %v902, %v1067
    %v1223 = vmul.f32 %v903, %v1067
    %v1224 = vmul.f32 %v904, %v1072
    %v1225 = vmul.f32 %v905, %v1072
    %v1226 = vmul.f32 %v906, %v1072
    %v1227 = vmul.f32 %v907, %v1072
    %v1228 = vmul.f32 %v908, %v1077
    %v1229 = vmul.f32 %v909, %v1077
    %v1230 = vmul.f32 %v910, %v1077
    %v1231 = vmul.f32 %v911, %v1077
    %v1232 = vmul.f32 %v912, %v1082
    %v1233 = vmul.f32 %v913, %v1082
    %v1234 = vmul.f32 %v914, %v1082
    %v1235 = vmul.f32 %v915, %v1082
    %v1236 = vmul.f32 %v916, %v1087
    %v1237 = vmul.f32 %v917, %v1087
    %v1238 = vmul.f32 %v918, %v1087
    %v1239 = vmul.f32 %v919, %v1087
    %v1240 = vmul.f32 %v920, %v1092
    %v1241 = vmul.f32 %v921, %v1092
    %v1242 = vmul.f32 %v922, %v1092
    %v1243 = vmul.f32 %v923, %v1092
    %v1244 = vmul.f32 %v924, %v1097
    %v1245 = vmul.f32 %v925, %v1097
    %v1246 = vmul.f32 %v926, %v1097
    %v1247 = vmul.f32 %v927, %v1097
    %v1248 = vmul.f32 %v928, %v1102
    %v1249 = vmul.f32 %v929, %v1102
    %v1250 = vmul.f32 %v930, %v1102
    %v1251 = vmul.f32 %v931, %v1102
    %v1252 = vmul.f32 %v932, %v1107
    %v1253 = vmul.f32 %v933, %v1107
    %v1254 = vmul.f32 %v934, %v1107
    %v1255 = vmul.f32 %v935, %v1107
    %v1256 = vmul.f32 %v936, %v1112
    %v1257 = vmul.f32 %v937, %v1112
    %v1258 = vmul.f32 %v938, %v1112
    %v1259 = vmul.f32 %v939, %v1112
    %v1260 = vmul.f32 %v940, %v1117
    %v1261 = vmul.f32 %v941, %v1117
    %v1262 = vmul.f32 %v942, %v1117
    %v1263 = vmul.f32 %v943, %v1117
    %v1264 = vmul.f32 %v944, %v1122
    %v1265 = vmul.f32 %v945, %v1122
    %v1266 = vmul.f32 %v946, %v1122
    %v1267 = vmul.f32 %v947, %v1122
    %v1268 = vmul.f32 %v948, %v1127
    %v1269 = vmul.f32 %v949, %v1127
    %v1270 = vmul.f32 %v950, %v1127
    %v1271 = vmul.f32 %v951, %v1127
    %v1272 = vmul.f32 %v952, %v1132
    %v1273 = vmul.f32 %v953, %v1132
    %v1274 = vmul.f32 %v954, %v1132
    %v1275 = vmul.f32 %v955, %v1132
    %v1276 = vmul.f32 %v956, %v1137
    %v1277 = vmul.f32 %v957, %v1137
    %v1278 = vmul.f32 %v958, %v1137
    %v1279 = vmul.f32 %v959, %v1137
    %v1280 = vmul.f32 %v960, %v1142
    %v1281 = vmul.f32 %v961, %v1142
    %v1282 = vmul.f32 %v962, %v1142
    %v1283 = vmul.f32 %v963, %v1142
    %v1284 = vmul.f32 %v964, %v1147
    %v1285 = vmul.f32 %v965, %v1147
    %v1286 = vmul.f32 %v966, %v1147
    %v1287 = vmul.f32 %v967, %v1147
    %v1288 = vmul.f32 %v968, %v1152
    %v1289 = vmul.f32 %v969, %v1152
    %v1290 = vmul.f32 %v970, %v1152
    %v1291 = vmul.f32 %v971, %v1152
    %v1292 = vmul.f32 %v972, %v1157
    %v1293 = vmul.f32 %v973, %v1157
    %v1294 = vmul.f32 %v974, %v1157
    %v1295 = vmul.f32 %v975, %v1157
    %v1296 = vmul.f32 %v976, %v1162
    %v1297 = vmul.f32 %v977, %v1162
    %v1298 = vmul.f32 %v978, %v1162
    %v1299 = vmul.f32 %v979, %v1162
    %v1300 = vmul.f32 %v980, %v1167
    %v1301 = vmul.f32 %v981, %v1167
    %v1302 = vmul.f32 %v982, %v1167
    %v1303 = vmul.f32 %v983, %v1167
    %v1304 = vmul.f32 %v984, %v1172
    %v1305 = vmul.f32 %v985, %v1172
    %v1306 = vmul.f32 %v986, %v1172
    %v1307 = vmul.f32 %v987, %v1172
    %v1308 = vmul.f32 %v988, %v1177
    %v1309 = vmul.f32 %v989, %v1177
    %v1310 = vmul.f32 %v990, %v1177
    %v1311 = vmul.f32 %v991, %v1177
    %v1312 = vmul.f32 %v992, %v1182
    %v1313 = vmul.f32 %v993, %v1182
    %v1314 = vmul.f32 %v994, %v1182
    %v1315 = vmul.f32 %v995, %v1182
    %v1316 = vmul.f32 %v996, %v1187
    %v1317 = vmul.f32 %v997, %v1187
    %v1318 = vmul.f32 %v998, %v1187
    %v1319 = vmul.f32 %v999, %v1187
    %v1320 = vmul.f32 %v1000, %v1192
    %v1321 = vmul.f32 %v1001, %v1192
    %v1322 = vmul.f32 %v1002, %v1192
    %v1323 = vmul.f32 %v1003, %v1192
    %v1324 = vmul.f32 %v1004, %v1197
    %v1325 = vmul.f32 %v1005, %v1197
    %v1326 = vmul.f32 %v1006, %v1197
    %v1327 = vmul.f32 %v1007, %v1197
    %v1328 = vmul.f32 %v1008, %v1202
    %v1329 = vmul.f32 %v1009, %v1202
    %v1330 = vmul.f32 %v1010, %v1202
    %v1331 = vmul.f32 %v1011, %v1202
    %v1332 = vadd.f32 %v1204, %v1208
    %v1333 = vadd.f32 %v1332, %v1212
    %v1334 = vadd.f32 %v1333, %v1216
    %v1335 = vadd.f32 %v1334, %v1220
    %v1336 = vadd.f32 %v1335, %v1224
    %v1337 = vadd.f32 %v1336, %v1228
    %v1338 = vadd.f32 %v1337, %v1232
    %v1339 = vadd.f32 %v1338, %v1236
    %v1340 = vadd.f32 %v1339, %v1240
    %v1341 = vadd.f32 %v1340, %v1244
    %v1342 = vadd.f32 %v1341, %v1248
    %v1343 = vadd.f32 %v1342, %v1252
    %v1344 = vadd.f32 %v1343, %v1256
    %v1345 = vadd.f32 %v1344, %v1260
    %v1346 = vadd.f32 %v1345, %v1264
    %v1347 = vadd.f32 %v1346, %v1268
    %v1348 = vadd.f32 %v1347, %v1272
    %v1349 = vadd.f32 %v1348, %v1276
    %v1350 = vadd.f32 %v1349, %v1280
    %v1351 = vadd.f32 %v1350, %v1284
    %v1352 = vadd.f32 %v1351, %v1288
    %v1353 = vadd.f32 %v1352, %v1292
    %v1354 = vadd.f32 %v1353, %v1296
    %v1355 = vadd.f32 %v1354, %v1300
    %v1356 = vadd.f32 %v1355, %v1304
    %v1357 = vadd.f32 %v1356, %v1308
    %v1358 = vadd.f32 %v1357, %v1312
    %v1359 = vadd.f32 %v1358, %v1316
    %v1360 = vadd.f32 %v1359, %v1320
    %v1361 = vadd.f32 %v1360, %v1324
    %v1362 = vadd.f32 %v1361, %v1328
    %v1363 = vrot.slane %v1362, 4
    %v1364 = vadd.f32 %v1362, %v1363
    %v1365 = vrot.slane %v1364, 2
    %v1366 = vadd.f32 %v1364, %v1365
    %v1367 = vrot.slane %v1366, 1
    %v1368 = vadd.f32 %v1366, %v1367
    %v1369 = vadd.f32 %v1205, %v1209
    %v1370 = vadd.f32 %v1369, %v1213
    %v1371 = vadd.f32 %v1370, %v1217
    %v1372 = vadd.f32 %v1371, %v1221
    %v1373 = vadd.f32 %v1372, %v1225
    %v1374 = vadd.f32 %v1373, %v1229
    %v1375 = vadd.f32 %v1374, %v1233
    %v1376 = vadd.f32 %v1375, %v1237
    %v1377 = vadd.f32 %v1376, %v1241
    %v1378 = vadd.f32 %v1377, %v1245
    %v1379 = vadd.f32 %v1378, %v1249
    %v1380 = vadd.f32 %v1379, %v1253
    %v1381 = vadd.f32 %v1380, %v1257
    %v1382 = vadd.f32 %v1381, %v1261
    %v1383 = vadd.f32 %v1382, %v1265
    %v1384 = vadd.f32 %v1383, %v1269
    %v1385 = vadd.f32 %v1384, %v1273
    %v1386 = vadd.f32 %v1385, %v1277
    %v1387 = vadd.f32 %v1386, %v1281
    %v1388 = vadd.f32 %v1387, %v1285
    %v1389 = vadd.f32 %v1388, %v1289
    %v1390 = vadd.f32 %v1389, %v1293
    %v1391 = vadd.f32 %v1390, %v1297
    %v1392 = vadd.f32 %v1391, %v1301
    %v1393 = vadd.f32 %v1392, %v1305
    %v1394 = vadd.f32 %v1393, %v1309
    %v1395 = vadd.f32 %v1394, %v1313
    %v1396 = vadd.f32 %v1395, %v1317
    %v1397 = vadd.f32 %v1396, %v1321
    %v1398 = vadd.f32 %v1397, %v1325
    %v1399 = vadd.f32 %v1398, %v1329
    %v1400 = vrot.slane %v1399, 4
    %v1401 = vadd.f32 %v1399, %v1400
    %v1402 = vrot.slane %v1401, 2
    %v1403 = vadd.f32 %v1401, %v1402
    %v1404 = vrot.slane %v1403, 1
    %v1405 = vadd.f32 %v1403, %v1404
    %v1406 = vadd.f32 %v1206, %v1210
    %v1407 = vadd.f32 %v1406, %v1214
    %v1408 = vadd.f32 %v1407, %v1218
    %v1409 = vadd.f32 %v1408, %v1222
    %v1410 = vadd.f32 %v1409, %v1226
    %v1411 = vadd.f32 %v1410, %v1230
    %v1412 = vadd.f32 %v1411, %v1234
    %v1413 = vadd.f32 %v1412, %v1238
    %v1414 = vadd.f32 %v1413, %v1242
    %v1415 = vadd.f32 %v1414, %v1246
    %v1416 = vadd.f32 %v1415, %v1250
    %v1417 = vadd.f32 %v1416, %v1254
    %v1418 = vadd.f32 %v1417, %v1258
    %v1419 = vadd.f32 %v1418, %v1262
    %v1420 = vadd.f32 %v1419, %v1266
    %v1421 = vadd.f32 %v1420, %v1270
    %v1422 = vadd.f32 %v1421, %v1274
    %v1423 = vadd.f32 %v1422, %v1278
    %v1424 = vadd.f32 %v1423, %v1282
    %v1425 = vadd.f32 %v1424, %v1286
    %v1426 = vadd.f32 %v1425, %v1290
    %v1427 = vadd.f32 %v1426, %v1294
    %v1428 = vadd.f32 %v1427, %v1298
    %v1429 = vadd.f32 %v1428, %v1302
    %v1430 = vadd.f32 %v1429, %v1306
    %v1431 = vadd.f32 %v1430, %v1310
    %v1432 = vadd.f32 %v1431, %v1314
    %v1433 = vadd.f32 %v1432, %v1318
    %v1434 = vadd.f32 %v1433, %v1322
    %v1435 = vadd.f32 %v1434, %v1326
    %v1436 = vadd.f32 %v1435, %v1330
    %v1437 = vrot.slane %v1436, 4
    %v1438 = vadd.f32 %v1436, %v1437
    %v1439 = vrot.slane %v1438, 2
    %v1440 = vadd.f32 %v1438, %v1439
    %v1441 = vrot.slane %v1440, 1
    %v1442 = vadd.f32 %v1440, %v1441
    %v1443 = vadd.f32 %v1207, %v1211
    %v1444 = vadd.f32 %v1443, %v1215
    %v1445 = vadd.f32 %v1444, %v1219
    %v1446 = vadd.f32 %v1445, %v1223
    %v1447 = vadd.f32 %v1446, %v1227
    %v1448 = vadd.f32 %v1447, %v1231
    %v1449 = vadd.f32 %v1448, %v1235
    %v1450 = vadd.f32 %v1449, %v1239
    %v1451 = vadd.f32 %v1450, %v1243
    %v1452 = vadd.f32 %v1451, %v1247
    %v1453 = vadd.f32 %v1452, %v1251
    %v1454 = vadd.f32 %v1453, %v1255
    %v1455 = vadd.f32 %v1454, %v1259
    %v1456 = vadd.f32 %v1455, %v1263
    %v1457 = vadd.f32 %v1456, %v1267
    %v1458 = vadd.f32 %v1457, %v1271
    %v1459 = vadd.f32 %v1458, %v1275
    %v1460 = vadd.f32 %v1459, %v1279
    %v1461 = vadd.f32 %v1460, %v1283
    %v1462 = vadd.f32 %v1461, %v1287
    %v1463 = vadd.f32 %v1462, %v1291
    %v1464 = vadd.f32 %v1463, %v1295
    %v1465 = vadd.f32 %v1464, %v1299
    %v1466 = vadd.f32 %v1465, %v1303
    %v1467 = vadd.f32 %v1466, %v1307
    %v1468 = vadd.f32 %v1467, %v1311
    %v1469 = vadd.f32 %v1468, %v1315
    %v1470 = vadd.f32 %v1469, %v1319
    %v1471 = vadd.f32 %v1470, %v1323
    %v1472 = vadd.f32 %v1471, %v1327
    %v1473 = vadd.f32 %v1472, %v1331
    %v1474 = vrot.slane %v1473, 4
    %v1475 = vadd.f32 %v1473, %v1474
    %v1476 = vrot.slane %v1475, 2
    %v1477 = vadd.f32 %v1475, %v1476
    %v1478 = vrot.slane %v1477, 1
    %v1479 = vadd.f32 %v1477, %v1478
    %s1480 = sld [smem:[#allocation2]]
    %v1481 = vstv %s1480
    %v1482 = vadd.f32 %v1368, %v1481
    %v1483 = vadd.f32 %v1405, %v1481
    %v1484 = vadd.f32 %v1442, %v1481
    %v1485 = vadd.f32 %v1479, %v1481
    %v1490 = vrot.slane %v1483, 7
    %v1491 = vrot.slane %v1484, 6
    %v1492 = vrot.slane %v1485, 5
    %vm1493 = vcmask 1040384
    %v1494 = vsel %vm1493, %v1482, %v1490
    %vm1495 = vcmask 1042434
    %v1496 = vsel %vm1495, %v1491, %v1492
    %vm1497 = vcmask 1041408
    %v1498 = vsel %vm1497, %v1494, %v1496
    %v1500 = vlaneseq
    %vm1501 = vcmp.ge.s32.totalorder %v1500, 0
    %vm1502 = vcmp.lt.s32.totalorder %v1500, 512
    %vm1503 = vmand %vm1501, %vm1502
    %1504 = vst.msk [vmem:[#allocation3] sm:$0xf] %vm1503, %v1498
    // Predicated region
    $region22: #{tpu_custom_call.1} parent=1 // pred_check
      _
    $region23: #{tpu_custom_call.1} parent=1 // pred_check_branch
      %1506 = sbr.rel (0) target = $region25
    $region24: #{tpu_custom_call.1} parent=1 // pred_region
      %1508 = vsyncadd [#allocation4], 0
      %s1510 = sshll.u32 [#allocation3], 4
      %s1511 = int_to_ptr.vmem [resolvable:$true] %s1510
      %s1512 = sshll.u32 %s5, 4
      %s1513 = int_to_ptr.hbm [resolvable:$true] %s1512
      %1515 = dma.vmem_to_hbm [thread:$0]  %s1511, 64, %s1513, [#allocation4]
    $region25: #{tpu_custom_call.1} parent=1 // pred_fallthru
      _
    // Predicated region
    $region26: #{tpu_custom_call.1} parent=1 // pred_check
      _
    $region27: #{tpu_custom_call.1} parent=1 // pred_check_branch
      %1517 = sbr.rel (0) target = $region29
    $region28: #{tpu_custom_call.1} parent=1 // pred_region
      %1519 = dma.done [#allocation4], 64
    $region29: #{tpu_custom_call.1} parent=1 // pred_fallthru
      _
    %1520 = vsyncpa [#allocation4], 1

</llo_original>
